<compile_context>
chip_gen: v6e
topology: v6e:2x2x1
jax: 0.10.0
libtpu: 0.0.40
codegen_flags: <defaults>
</compile_context>

<pallas_src>
import functools

import jax
import jax.numpy as jnp
from jax.experimental import pallas as pl
from jax.experimental.pallas import tpu as pltpu


# ----------------------------- glue (plain JAX) -----------------------------

def div_sixteen_mul(v):
    v = int(v)
    m = v % 16
    return (v // 16) * 16 + (16 if m > 0 else 0)


def _patches(x):
    """x: (B, C, H, W) NCHW -> (C, P, N), P=(H_p/16)*(W_p/16), N=B*256."""
    B, C, H, W = x.shape
    h_p, w_p = div_sixteen_mul(H), div_sixteen_mul(W)
    x = jnp.transpose(x, (1, 0, 2, 3))  # (C, B, H, W)
    if (h_p, w_p) != (H, W):
        # PyTorch F.interpolate(bilinear, align_corners=False) == half-pixel
        # centers; always an upsample here, so no antialias concerns.
        x = jax.image.resize(x, (C, B, h_p, w_p), method="bilinear")
    u, v = h_p // 16, w_p // 16
    x = x.reshape(C, B, u, 16, v, 16)
    x = jnp.transpose(x, (0, 2, 4, 1, 3, 5))  # (C, u, v, B, 16, 16)
    # TODO(synk): fold this rearrange into the kernel's input DMA (BlockSpec
    # over the (C,B,H_p,W_p) tensor) to remove this extra HBM pass entirely;
    # for now it runs in bf16, which halves its bandwidth cost vs fp32.
    return x.reshape(C, u * v, B * 16 * 16)


def _choose_cb(C, P, N, itemsize, budget_bytes=24 * 1024 * 1024):
    """Channels per grid step: largest divisor of C within a VMEM budget."""
    # per channel: 2 inputs x 2 pipeline buffers x (P, N) tile
    #              + ~6 fp32 (P, P) gram temporaries
    per_c = 4 * P * N * itemsize + 6 * P * P * 4
    cb_max = int(min(max(1, budget_bytes // per_c), C))
    for cb in range(cb_max, 0, -1):
        if C % cb == 0:
            return cb
    return 1


# ------------------------------ Pallas kernel -------------------------------

def _atloss_kernel(s_ref, t_ref, out_ref, *, alpha, p_true):
    s = s_ref[...]  # (Cb, P, N) bf16
    t = t_ref[...]

    # Batched gram = x @ x.T per channel: bf16 MXU matmul, fp32 accumulation.
    gram_s = jnp.einsum("cpn,cqn->cpq", s, s,
                        preferred_element_type=jnp.float32)
    gram_t = jnp.einsum("cpn,cqn->cpq", t, t,
                        preferred_element_type=jnp.float32)

    # Exact fold of F.normalize(dim=1, eps=1e-12) + squared-difference loss:
    #   gs_r = gram_s_r / d_s_r with d = max(||row||, eps)
    #   sum((gs-gt)^2) - alpha*sum(gs^2+gt^2)
    #     = sum_r [(1-alpha)(n_s/d_s^2 + n_t/d_t^2) - 2*dot_st/(d_s*d_t)]
    # Zero rows contribute exactly 0.
    eps = 1e-12
    n_s = jnp.sum(gram_s * gram_s, axis=-1, keepdims=True)     # (Cb, P, 1)
    n_t = jnp.sum(gram_t * gram_t, axis=-1, keepdims=True)
    dot_st = jnp.sum(gram_s * gram_t, axis=-1, keepdims=True)

    d_s = jnp.maximum(jnp.sqrt(n_s), eps)
    d_t = jnp.maximum(jnp.sqrt(n_t), eps)

    per_row = ((1.0 - alpha) * (n_s / (d_s * d_s) + n_t / (d_t * d_t))
               - 2.0 * dot_st / (d_s * d_t))
    partial = jnp.sum(per_row) * (1.0 / float(p_true * p_true))

    # Lane-dense (8,128) block per grid step; no cross-step carry.
    out_ref[...] = jnp.full(out_ref.shape, partial, dtype=out_ref.dtype)


def at_loss_patch_mmd(s_feature, t_feature, *, loss_weight=1.0, alpha=0.5,
                      compute_dtype=jnp.bfloat16):
    """Forward of ATLoss_patch_mmd. Inputs are NCHW (B, C, H, W)."""
    assert s_feature.shape[1] == t_feature.shape[1]
    C = s_feature.shape[1]

    # t_feature_cropped, s_feature_cropped = patches(t_feature, s_feature)
    # Keep the patched HBM copies (and the rearrange pass) in bf16.
    t_p = _patches(t_feature.astype(compute_dtype))
    s_p = _patches(s_feature.astype(compute_dtype))
    assert t_p.shape == s_p.shape
    _, P, N = s_p.shape

    # Channels per grid step (exact divisor of C -> no channel padding).
    cb = _choose_cb(C, P, N, jnp.dtype(compute_dtype).itemsize)
    grid = C // cb

    # The (P, N) block spans the full last-two dims, which satisfies the TPU
    # BlockSpec layout rule without any zero-padding of P.
    # TODO(synk): for very large feature maps where one (cb,P,N) tile no
    # longer fits VMEM, add a second grid axis K-splitting N with a fp32 gram
    # accumulator in scratch; not needed for typical detection/cls shapes.

    kernel = functools.partial(_atloss_kernel, alpha=float(alpha),
                               p_true=int(P))
    partials = pl.pallas_call(
        kernel,
        out_shape=jax.ShapeDtypeStruct((grid, 8, 128), jnp.float32),
        grid_spec=pltpu.PrefetchScalarGridSpec(
            num_scalar_prefetch=0,
            grid=(grid,),
            in_specs=[
                pl.BlockSpec((cb, P, N), lambda g: (g, 0, 0)),
                pl.BlockSpec((cb, P, N), lambda g: (g, 0, 0)),
            ],
            out_specs=pl.BlockSpec((1, 8, 128), lambda g: (g, 0, 0)),
        ),
        compiler_params=pltpu.CompilerParams(
            dimension_semantics=("parallel",),
            vmem_limit_bytes=48 * 1024 * 1024),
    )(s_p, t_p)

    loss_sum = jnp.sum(partials[:, 0, 0])
    return (loss_weight / C) * loss_sum


# --------------------------- pure-JAX reference ------------------------------

def _reference(s_feature, t_feature, *, loss_weight=1.0, alpha=0.5):
    C = s_feature.shape[1]
    t_p = _patches(t_feature.astype(jnp.float32))
    s_p = _patches(s_feature.astype(jnp.float32))

    def gram(x):
        g = x @ x.T
        n = jnp.sqrt(jnp.sum(g * g, axis=1, keepdims=True))
        return g / jnp.maximum(n, 1e-12)

    loss = 0.0
    for i in range(C):
        gs, gt = gram(s_p[i]), gram(t_p[i])
        loss += jnp.mean((gs - gt) ** 2) - alpha * jnp.mean(gs ** 2 + gt ** 2)
    return (1.0 / C) * loss_weight * loss


# ----------------------------------- main ------------------------------------

if __name__ == "__main__":
    key = jax.random.PRNGKey(0)
    k1, k2 = jax.random.split(key)

    B, C, H, W = 2, 4, 32, 32  # H, W multiples of 16 -> interpolate is identity
    s_feature = jax.random.normal(k1, (B, C, H, W), dtype=jnp.float32)
    t_feature = jax.random.normal(k2, (B, C, H, W), dtype=jnp.float32)

    fwd = jax.jit(functools.partial(at_loss_patch_mmd,
                                    loss_weight=1.0, alpha=0.5))
    out = jax.block_until_ready(fwd(s_feature, t_feature))

    ref = _reference(s_feature, t_feature, loss_weight=1.0, alpha=0.5)
    # bf16 HBM storage / bf16 MXU operands (fp32 accumulation) -> looser rtol.
    if not jnp.allclose(out, ref, rtol=1e-2, atol=1e-4):
        raise AssertionError(f"mismatch: pallas={out} ref={ref}")

    print("KERNEL_OK")
</pallas_src>

<mosaic_0001>
module attributes {stable_mosaic.version = 11 : i64} {
  func.func @_atloss_kernel(%arg0: i32, %arg1: memref<4x4x512xbf16, #tpu.memory_space<vmem>>, %arg2: memref<4x4x512xbf16, #tpu.memory_space<vmem>>, %arg3: memref<1x8x128xf32, #tpu.memory_space<vmem>>) attributes {dimension_semantics = [#tpu.dimension_semantics<parallel>], iteration_bounds = array<i64: 1>, scalar_prefetch = 0 : i64, scratch_operands = 0 : i64, tpu.core_type = #tpu.core_type<tc>, window_params = [{transform_indices = @transform_0, window_bounds = array<i64: 4, 4, 512>}, {transform_indices = @transform_1, window_bounds = array<i64: 4, 4, 512>}, {transform_indices = @transform_2, window_bounds = array<i64: 1, 8, 128>}]} {
    %c0 = arith.constant 0 : index
    %c0_0 = arith.constant 0 : index
    %c0_1 = arith.constant 0 : index
    %0 = vector.load %arg1[%c0, %c0_0, %c0_1] : memref<4x4x512xbf16, #tpu.memory_space<vmem>>, vector<4x4x512xbf16>
    %c0_2 = arith.constant 0 : index
    %c0_3 = arith.constant 0 : index
    %c0_4 = arith.constant 0 : index
    %1 = vector.load %arg2[%c0_2, %c0_3, %c0_4] : memref<4x4x512xbf16, #tpu.memory_space<vmem>>, vector<4x4x512xbf16>
    "tpu.trace_start"() <{level = 10 : i32, message = "cpn,cqn->cpq"}> : () -> ()
    %cst = arith.constant dense<0.000000e+00> : vector<4x4x4xf32>
    %2 = tpu.matmul %0, %0, %cst {dimension_numbers = #tpu.dot_dimension_numbers<[2], [2], [1], [1], [0, 0, 0, 1, 1, 1], [0], [0]>} : vector<4x4x512xbf16>, vector<4x4x512xbf16>, vector<4x4x4xf32> -> vector<4x4x4xf32>
    %cst_5 = arith.constant dense<0.000000e+00> : vector<4x4x4xf32>
    %3 = tpu.matmul %1, %1, %cst_5 {dimension_numbers = #tpu.dot_dimension_numbers<[2], [2], [1], [1], [0, 0, 0, 1, 1, 1], [0], [0]>} : vector<4x4x512xbf16>, vector<4x4x512xbf16>, vector<4x4x4xf32> -> vector<4x4x4xf32>
    "tpu.trace_stop"() : () -> ()
    %4 = arith.mulf %2, %2 : vector<4x4x4xf32>
    %cst_6 = arith.constant dense<0.000000e+00> : vector<4x4xf32>
    %5 = vector.multi_reduction <add>, %4, %cst_6 [2] : vector<4x4x4xf32> to vector<4x4xf32>
    %6 = vector.shape_cast %5 : vector<4x4xf32> to vector<4x4x1xf32>
    %7 = arith.mulf %3, %3 : vector<4x4x4xf32>
    %cst_7 = arith.constant dense<0.000000e+00> : vector<4x4xf32>
    %8 = vector.multi_reduction <add>, %7, %cst_7 [2] : vector<4x4x4xf32> to vector<4x4xf32>
    %9 = vector.shape_cast %8 : vector<4x4xf32> to vector<4x4x1xf32>
    %10 = arith.mulf %2, %3 : vector<4x4x4xf32>
    %cst_8 = arith.constant dense<0.000000e+00> : vector<4x4xf32>
    %11 = vector.multi_reduction <add>, %10, %cst_8 [2] : vector<4x4x4xf32> to vector<4x4xf32>
    %12 = vector.shape_cast %11 : vector<4x4xf32> to vector<4x4x1xf32>
    %13 = math.sqrt %6 : vector<4x4x1xf32>
    %cst_9 = arith.constant 9.99999996E-13 : f32
    %14 = vector.broadcast %cst_9 : f32 to vector<4x4x1xf32>
    %15 = arith.maximumf %13, %14 : vector<4x4x1xf32>
    %16 = math.sqrt %9 : vector<4x4x1xf32>
    %cst_10 = arith.constant 9.99999996E-13 : f32
    %17 = vector.broadcast %cst_10 : f32 to vector<4x4x1xf32>
    %18 = arith.maximumf %16, %17 : vector<4x4x1xf32>
    %19 = arith.mulf %15, %15 : vector<4x4x1xf32>
    %20 = arith.divf %6, %19 : vector<4x4x1xf32>
    %21 = arith.mulf %18, %18 : vector<4x4x1xf32>
    %22 = arith.divf %9, %21 : vector<4x4x1xf32>
    %23 = arith.addf %20, %22 : vector<4x4x1xf32>
    %cst_11 = arith.constant 5.000000e-01 : f32
    %24 = vector.broadcast %cst_11 : f32 to vector<4x4x1xf32>
    %25 = arith.mulf %24, %23 : vector<4x4x1xf32>
    %cst_12 = arith.constant 2.000000e+00 : f32
    %26 = vector.broadcast %cst_12 : f32 to vector<4x4x1xf32>
    %27 = arith.mulf %26, %12 : vector<4x4x1xf32>
    %28 = arith.mulf %15, %18 : vector<4x4x1xf32>
    %29 = arith.divf %27, %28 : vector<4x4x1xf32>
    %30 = arith.subf %25, %29 : vector<4x4x1xf32>
    %31 = vector.shape_cast %30 : vector<4x4x1xf32> to vector<1x4x4x1xf32>
    %cst_13 = arith.constant dense<0.000000e+00> : vector<1xf32>
    %32 = vector.multi_reduction <add>, %31, %cst_13 [1, 2, 3] : vector<1x4x4x1xf32> to vector<1xf32>
    %33 = vector.shape_cast %32 : vector<1xf32> to vector<1x1x1x1xf32>
    %34 = vector.extract %33[0, 0, 0, 0] : f32 from vector<1x1x1x1xf32>
    %cst_14 = arith.constant 6.250000e-02 : f32
    %35 = arith.mulf %34, %cst_14 : f32
    %36 = vector.broadcast %35 : f32 to vector<1x8x128xf32>
    %c0_15 = arith.constant 0 : index
    %c0_16 = arith.constant 0 : index
    %c0_17 = arith.constant 0 : index
    %37 = vector.load %arg3[%c0_15, %c0_16, %c0_17] : memref<1x8x128xf32, #tpu.memory_space<vmem>>, vector<1x8x128xf32>
    tpu.vector_store %arg3[%c0_15, %c0_16, %c0_17], %36 {strides = array<i32>} : memref<1x8x128xf32, #tpu.memory_space<vmem>>, vector<1x8x128xf32>,
    return
  }
  func.func @transform_0(%arg0: i32) -> (i32, i32, i32) {
    %c0_i32 = arith.constant 0 : i32
    %c0_i32_0 = arith.constant 0 : i32
    %c0_i32_1 = arith.constant 0 : i32
    return %arg0, %c0_i32, %c0_i32_0 : i32, i32, i32
  }
  func.func @transform_1(%arg0: i32) -> (i32, i32, i32) {
    %c0_i32 = arith.constant 0 : i32
    %c0_i32_0 = arith.constant 0 : i32
    %c0_i32_1 = arith.constant 0 : i32
    return %arg0, %c0_i32, %c0_i32_0 : i32, i32, i32
  }
  func.func @transform_2(%arg0: i32) -> (i32, i32, i32) {
    %c0_i32 = arith.constant 0 : i32
    %c0_i32_0 = arith.constant 0 : i32
    %c0_i32_1 = arith.constant 0 : i32
    return %arg0, %c0_i32, %c0_i32_0 : i32, i32, i32
  }
}

</mosaic_0001>

<llo_original>
// kernel: at_loss_patch_mmd.1
$region0: #{at_loss_patch_mmd.1}
  #allocation0 [shape = 'u32[]', space=smem, size = 0x4, offset = 0x4, fixed_abs, tag = 'smem constant byte address 0x4 - core index']
  #allocation1 [shape = 'u32[144,128]{1,0:T(1,128)}', space=vmem, size = 0x12000, scoped, tag = 'internal scratch']
  %s0 = inlined_call_operand.vmem [shape: bf16[4,4,512], index: 0, kind: input, shape index: {}]
  %s1 = inlined_call_operand.vmem [shape: bf16[4,4,512], index: 1, kind: input, shape index: {}]
  %s2 = inlined_call_operand.vmem [shape: f32[1,8,128], index: 2, kind: output, shape index: {}]
  %s3 = sld [smem:[#allocation0]]
  $region18: #{at_loss_patch_mmd.1} parent=0
    _
  %s5 = ssub.s32 1, %s3
  %s6 = scalar_select 0, %s5, %s3
  // Predicated region
  $region2: #{at_loss_patch_mmd.1} parent=0 // pred_check
    _
  $region3: #{at_loss_patch_mmd.1} parent=0 // pred_check_branch
    %8 = sbr.rel (0) target = $region5
  $region4: #{at_loss_patch_mmd.1} parent=0 // pred_region
    _
  $region5: #{at_loss_patch_mmd.1} parent=0 // pred_fallthru
    _
  // Predicated region
  $region6: #{at_loss_patch_mmd.1} parent=0 // pred_check
    _
  $region7: #{at_loss_patch_mmd.1} parent=0 // pred_check_branch
    %10 = sbr.rel (0) target = $region9
  $region8: #{at_loss_patch_mmd.1} parent=0 // pred_region
    _
  $region9: #{at_loss_patch_mmd.1} parent=0 // pred_fallthru
    _
  %v12 = vld [vmem:[%s0] sm:$0xff]
  %v13 = vld [vmem:[%s0 + $0x8] sm:$0xff]
  %v14 = vld [vmem:[%s0 + $0x10] sm:$0xff]
  %v15 = vld [vmem:[%s0 + $0x18] sm:$0xff]
  %v16 = vld [vmem:[%s1] sm:$0xff]
  %v17 = vld [vmem:[%s1 + $0x8] sm:$0xff]
  %v18 = vld [vmem:[%s1 + $0x10] sm:$0xff]
  %v19 = vld [vmem:[%s1 + $0x18] sm:$0xff]
  %v21 = vcombine.high %v12, %v12
  %v23 = vunpack.c.l.s4 1983009808
  %v24 = vunpack.c.0.s8 %v23
  %v25 = vlaneseq
  %v26 = vshrl.u32 %v25, 7
  %v27 = vsub.s32 %v24, %v26
  %v28 = vrot.slane %v12, %v27
  %v30 = vunpack.c.l.s4 1983009808
  %v31 = vunpack.c.0.s8 %v30
  %v32 = vlaneseq
  %v33 = vshrl.u32 %v32, 7
  %v34 = vsub.s32 %v31, %v33
  %v35 = vrot.slane %v21, %v34
  %v36 = vcombine.high %v28, %v28
  %v37 = vcombine.high %v35, %v35
  %42 = vmatprep.subr.bf16.mxu0 0
  %43 = vmatpush1.bf16.xpose.msra.mxu0 0
  %44 = vmatprep.subr.bf16.mxu0 0
  %45 = vmatpush1.bf16.xpose.msra.mxu0 0
  %46 = vmatprep.subr.bf16.mxu0 0
  %47 = vmatpush1.bf16.xpose.msra.mxu0 0
  %48 = vmatprep.subr.bf16.mxu0 0
  %49 = vmatpush1.bf16.xpose.msra.mxu0 0
  %50 = vmatprep.subr.bf16.mxu0 0
  %51 = vmatpush1.bf16.xpose.msra.mxu0 0
  %52 = vmatprep.subr.bf16.mxu0 0
  %53 = vmatpush1.bf16.xpose.msra.mxu0 0
  %54 = vmatprep.subr.bf16.mxu0 0
  %55 = vmatpush1.bf16.xpose.msra.mxu0 0
  %56 = vmatprep.subr.bf16.mxu0 %v36
  %57 = vmatpush1.bf16.xpose.msra.mxu0 %v28
  %58 = vmatprep.subr.bf16.mxu0 0
  %59 = vmatpush2.bf16.xpose.msra.mxu0 0
  %60 = vmatprep.subr.bf16.mxu0 0
  %61 = vmatpush2.bf16.xpose.msra.mxu0 0
  %62 = vmatprep.subr.bf16.mxu0 0
  %63 = vmatpush2.bf16.xpose.msra.mxu0 0
  %64 = vmatprep.subr.bf16.mxu0 0
  %65 = vmatpush2.bf16.xpose.msra.mxu0 0
  %66 = vmatprep.subr.bf16.mxu0 0
  %67 = vmatpush2.bf16.xpose.msra.mxu0 0
  %68 = vmatprep.subr.bf16.mxu0 0
  %69 = vmatpush2.bf16.xpose.msra.mxu0 0
  %70 = vmatprep.subr.bf16.mxu0 0
  %71 = vmatpush2.bf16.xpose.msra.mxu0 0
  %72 = vmatprep.subr.bf16.mxu0 0
  %73 = vmatpush2.bf16.xpose.msra.mxu0 0
  %74 = vmatprep.mubr.bf16.mxu0 %v36
  %75 = vmatmul.mubr.bf16.gmra.mxu0 %v28
  %v76 = vpop.f32.mrf.mxu0
  %v77 = vadd.f32 0.0, %v76
  %v78 = vpop.f32.mrf.mxu0
  %v79 = vpop.f32.mrf.mxu0
  %v80 = vpop.f32.mrf.mxu0
  %81 = vdwg.mxu0
  %82 = vmatprep.subr.bf16.mxu0 0
  %83 = vmatpush1.bf16.xpose.msra.mxu0 0
  %84 = vmatprep.subr.bf16.mxu0 0
  %85 = vmatpush1.bf16.xpose.msra.mxu0 0
  %86 = vmatprep.subr.bf16.mxu0 0
  %87 = vmatpush1.bf16.xpose.msra.mxu0 0
  %88 = vmatprep.subr.bf16.mxu0 0
  %89 = vmatpush1.bf16.xpose.msra.mxu0 0
  %90 = vmatprep.subr.bf16.mxu0 0
  %91 = vmatpush1.bf16.xpose.msra.mxu0 0
  %92 = vmatprep.subr.bf16.mxu0 0
  %93 = vmatpush1.bf16.xpose.msra.mxu0 0
  %94 = vmatprep.subr.bf16.mxu0 0
  %95 = vmatpush1.bf16.xpose.msra.mxu0 0
  %96 = vmatprep.subr.bf16.mxu0 %v37
  %97 = vmatpush1.bf16.xpose.msra.mxu0 %v35
  %98 = vmatprep.subr.bf16.mxu0 0
  %99 = vmatpush2.bf16.xpose.msra.mxu0 0
  %100 = vmatprep.subr.bf16.mxu0 0
  %101 = vmatpush2.bf16.xpose.msra.mxu0 0
  %102 = vmatprep.subr.bf16.mxu0 0
  %103 = vmatpush2.bf16.xpose.msra.mxu0 0
  %104 = vmatprep.subr.bf16.mxu0 0
  %105 = vmatpush2.bf16.xpose.msra.mxu0 0
  %106 = vmatprep.subr.bf16.mxu0 0
  %107 = vmatpush2.bf16.xpose.msra.mxu0 0
  %108 = vmatprep.subr.bf16.mxu0 0
  %109 = vmatpush2.bf16.xpose.msra.mxu0 0
  %110 = vmatprep.subr.bf16.mxu0 0
  %111 = vmatpush2.bf16.xpose.msra.mxu0 0
  %112 = vmatprep.subr.bf16.mxu0 0
  %113 = vmatpush2.bf16.xpose.msra.mxu0 0
  %114 = vmatprep.mubr.bf16.mxu0 %v37
  %115 = vmatmul.mubr.bf16.gmra.mxu0 %v35
  %v116 = vpop.f32.mrf.mxu0
  %v117 = vadd.f32 %v77, %v116
  %v118 = vpop.f32.mrf.mxu0
  %v119 = vpop.f32.mrf.mxu0
  %v120 = vpop.f32.mrf.mxu0
  %121 = vdwg.mxu0
  %v123 = vcombine.high %v13, %v13
  %v125 = vunpack.c.l.s4 1983009808
  %v126 = vunpack.c.0.s8 %v125
  %v127 = vlaneseq
  %v128 = vshrl.u32 %v127, 7
  %v129 = vsub.s32 %v126, %v128
  %v130 = vrot.slane %v13, %v129
  %v132 = vunpack.c.l.s4 1983009808
  %v133 = vunpack.c.0.s8 %v132
  %v134 = vlaneseq
  %v135 = vshrl.u32 %v134, 7
  %v136 = vsub.s32 %v133, %v135
  %v137 = vrot.slane %v123, %v136
  %v138 = vcombine.high %v130, %v130
  %v139 = vcombine.high %v137, %v137
  %144 = vmatprep.subr.bf16.mxu0 0
  %145 = vmatpush1.bf16.xpose.msra.mxu0 0
  %146 = vmatprep.subr.bf16.mxu0 0
  %147 = vmatpush1.bf16.xpose.msra.mxu0 0
  %148 = vmatprep.subr.bf16.mxu0 0
  %149 = vmatpush1.bf16.xpose.msra.mxu0 0
  %150 = vmatprep.subr.bf16.mxu0 0
  %151 = vmatpush1.bf16.xpose.msra.mxu0 0
  %152 = vmatprep.subr.bf16.mxu0 0
  %153 = vmatpush1.bf16.xpose.msra.mxu0 0
  %154 = vmatprep.subr.bf16.mxu0 0
  %155 = vmatpush1.bf16.xpose.msra.mxu0 0
  %156 = vmatprep.subr.bf16.mxu0 0
  %157 = vmatpush1.bf16.xpose.msra.mxu0 0
  %158 = vmatprep.subr.bf16.mxu0 %v138
  %159 = vmatpush1.bf16.xpose.msra.mxu0 %v130
  %160 = vmatprep.subr.bf16.mxu0 0
  %161 = vmatpush2.bf16.xpose.msra.mxu0 0
  %162 = vmatprep.subr.bf16.mxu0 0
  %163 = vmatpush2.bf16.xpose.msra.mxu0 0
  %164 = vmatprep.subr.bf16.mxu0 0
  %165 = vmatpush2.bf16.xpose.msra.mxu0 0
  %166 = vmatprep.subr.bf16.mxu0 0
  %167 = vmatpush2.bf16.xpose.msra.mxu0 0
  %168 = vmatprep.subr.bf16.mxu0 0
  %169 = vmatpush2.bf16.xpose.msra.mxu0 0
  %170 = vmatprep.subr.bf16.mxu0 0
  %171 = vmatpush2.bf16.xpose.msra.mxu0 0
  %172 = vmatprep.subr.bf16.mxu0 0
  %173 = vmatpush2.bf16.xpose.msra.mxu0 0
  %174 = vmatprep.subr.bf16.mxu0 0
  %175 = vmatpush2.bf16.xpose.msra.mxu0 0
  %176 = vmatprep.mubr.bf16.mxu0 %v138
  %177 = vmatmul.mubr.bf16.gmra.mxu0 %v130
  %v178 = vpop.f32.mrf.mxu0
  %v179 = vadd.f32 0.0, %v178
  %v180 = vpop.f32.mrf.mxu0
  %v181 = vpop.f32.mrf.mxu0
  %v182 = vpop.f32.mrf.mxu0
  %183 = vdwg.mxu0
  %184 = vmatprep.subr.bf16.mxu0 0
  %185 = vmatpush1.bf16.xpose.msra.mxu0 0
  %186 = vmatprep.subr.bf16.mxu0 0
  %187 = vmatpush1.bf16.xpose.msra.mxu0 0
  %188 = vmatprep.subr.bf16.mxu0 0
  %189 = vmatpush1.bf16.xpose.msra.mxu0 0
  %190 = vmatprep.subr.bf16.mxu0 0
  %191 = vmatpush1.bf16.xpose.msra.mxu0 0
  %192 = vmatprep.subr.bf16.mxu0 0
  %193 = vmatpush1.bf16.xpose.msra.mxu0 0
  %194 = vmatprep.subr.bf16.mxu0 0
  %195 = vmatpush1.bf16.xpose.msra.mxu0 0
  %196 = vmatprep.subr.bf16.mxu0 0
  %197 = vmatpush1.bf16.xpose.msra.mxu0 0
  %198 = vmatprep.subr.bf16.mxu0 %v139
  %199 = vmatpush1.bf16.xpose.msra.mxu0 %v137
  %200 = vmatprep.subr.bf16.mxu0 0
  %201 = vmatpush2.bf16.xpose.msra.mxu0 0
  %202 = vmatprep.subr.bf16.mxu0 0
  %203 = vmatpush2.bf16.xpose.msra.mxu0 0
  %204 = vmatprep.subr.bf16.mxu0 0
  %205 = vmatpush2.bf16.xpose.msra.mxu0 0
  %206 = vmatprep.subr.bf16.mxu0 0
  %207 = vmatpush2.bf16.xpose.msra.mxu0 0
  %208 = vmatprep.subr.bf16.mxu0 0
  %209 = vmatpush2.bf16.xpose.msra.mxu0 0
  %210 = vmatprep.subr.bf16.mxu0 0
  %211 = vmatpush2.bf16.xpose.msra.mxu0 0
  %212 = vmatprep.subr.bf16.mxu0 0
  %213 = vmatpush2.bf16.xpose.msra.mxu0 0
  %214 = vmatprep.subr.bf16.mxu0 0
  %215 = vmatpush2.bf16.xpose.msra.mxu0 0
  %216 = vmatprep.mubr.bf16.mxu0 %v139
  %217 = vmatmul.mubr.bf16.gmra.mxu0 %v137
  %v218 = vpop.f32.mrf.mxu0
  %v219 = vadd.f32 %v179, %v218
  %v220 = vpop.f32.mrf.mxu0
  %v221 = vpop.f32.mrf.mxu0
  %v222 = vpop.f32.mrf.mxu0
  %223 = vdwg.mxu0
  %v225 = vcombine.high %v14, %v14
  %v227 = vunpack.c.l.s4 1983009808
  %v228 = vunpack.c.0.s8 %v227
  %v229 = vlaneseq
  %v230 = vshrl.u32 %v229, 7
  %v231 = vsub.s32 %v228, %v230
  %v232 = vrot.slane %v14, %v231
  %v234 = vunpack.c.l.s4 1983009808
  %v235 = vunpack.c.0.s8 %v234
  %v236 = vlaneseq
  %v237 = vshrl.u32 %v236, 7
  %v238 = vsub.s32 %v235, %v237
  %v239 = vrot.slane %v225, %v238
  %v240 = vcombine.high %v232, %v232
  %v241 = vcombine.high %v239, %v239
  %246 = vmatprep.subr.bf16.mxu0 0
  %247 = vmatpush1.bf16.xpose.msra.mxu0 0
  %248 = vmatprep.subr.bf16.mxu0 0
  %249 = vmatpush1.bf16.xpose.msra.mxu0 0
  %250 = vmatprep.subr.bf16.mxu0 0
  %251 = vmatpush1.bf16.xpose.msra.mxu0 0
  %252 = vmatprep.subr.bf16.mxu0 0
  %253 = vmatpush1.bf16.xpose.msra.mxu0 0
  %254 = vmatprep.subr.bf16.mxu0 0
  %255 = vmatpush1.bf16.xpose.msra.mxu0 0
  %256 = vmatprep.subr.bf16.mxu0 0
  %257 = vmatpush1.bf16.xpose.msra.mxu0 0
  %258 = vmatprep.subr.bf16.mxu0 0
  %259 = vmatpush1.bf16.xpose.msra.mxu0 0
  %260 = vmatprep.subr.bf16.mxu0 %v240
  %261 = vmatpush1.bf16.xpose.msra.mxu0 %v232
  %262 = vmatprep.subr.bf16.mxu0 0
  %263 = vmatpush2.bf16.xpose.msra.mxu0 0
  %264 = vmatprep.subr.bf16.mxu0 0
  %265 = vmatpush2.bf16.xpose.msra.mxu0 0
  %266 = vmatprep.subr.bf16.mxu0 0
  %267 = vmatpush2.bf16.xpose.msra.mxu0 0
  %268 = vmatprep.subr.bf16.mxu0 0
  %269 = vmatpush2.bf16.xpose.msra.mxu0 0
  %270 = vmatprep.subr.bf16.mxu0 0
  %271 = vmatpush2.bf16.xpose.msra.mxu0 0
  %272 = vmatprep.subr.bf16.mxu0 0
  %273 = vmatpush2.bf16.xpose.msra.mxu0 0
  %274 = vmatprep.subr.bf16.mxu0 0
  %275 = vmatpush2.bf16.xpose.msra.mxu0 0
  %276 = vmatprep.subr.bf16.mxu0 0
  %277 = vmatpush2.bf16.xpose.msra.mxu0 0
  %278 = vmatprep.mubr.bf16.mxu0 %v240
  %279 = vmatmul.mubr.bf16.gmra.mxu0 %v232
  %v280 = vpop.f32.mrf.mxu0
  %v281 = vadd.f32 0.0, %v280
  %v282 = vpop.f32.mrf.mxu0
  %v283 = vpop.f32.mrf.mxu0
  %v284 = vpop.f32.mrf.mxu0
  %285 = vdwg.mxu0
  %286 = vmatprep.subr.bf16.mxu0 0
  %287 = vmatpush1.bf16.xpose.msra.mxu0 0
  %288 = vmatprep.subr.bf16.mxu0 0
  %289 = vmatpush1.bf16.xpose.msra.mxu0 0
  %290 = vmatprep.subr.bf16.mxu0 0
  %291 = vmatpush1.bf16.xpose.msra.mxu0 0
  %292 = vmatprep.subr.bf16.mxu0 0
  %293 = vmatpush1.bf16.xpose.msra.mxu0 0
  %294 = vmatprep.subr.bf16.mxu0 0
  %295 = vmatpush1.bf16.xpose.msra.mxu0 0
  %296 = vmatprep.subr.bf16.mxu0 0
  %297 = vmatpush1.bf16.xpose.msra.mxu0 0
  %298 = vmatprep.subr.bf16.mxu0 0
  %299 = vmatpush1.bf16.xpose.msra.mxu0 0
  %300 = vmatprep.subr.bf16.mxu0 %v241
  %301 = vmatpush1.bf16.xpose.msra.mxu0 %v239
  %302 = vmatprep.subr.bf16.mxu0 0
  %303 = vmatpush2.bf16.xpose.msra.mxu0 0
  %304 = vmatprep.subr.bf16.mxu0 0
  %305 = vmatpush2.bf16.xpose.msra.mxu0 0
  %306 = vmatprep.subr.bf16.mxu0 0
  %307 = vmatpush2.bf16.xpose.msra.mxu0 0
  %308 = vmatprep.subr.bf16.mxu0 0
  %309 = vmatpush2.bf16.xpose.msra.mxu0 0
  %310 = vmatprep.subr.bf16.mxu0 0
  %311 = vmatpush2.bf16.xpose.msra.mxu0 0
  %312 = vmatprep.subr.bf16.mxu0 0
  %313 = vmatpush2.bf16.xpose.msra.mxu0 0
  %314 = vmatprep.subr.bf16.mxu0 0
  %315 = vmatpush2.bf16.xpose.msra.mxu0 0
  %316 = vmatprep.subr.bf16.mxu0 0
  %317 = vmatpush2.bf16.xpose.msra.mxu0 0
  %318 = vmatprep.mubr.bf16.mxu0 %v241
  %319 = vmatmul.mubr.bf16.gmra.mxu0 %v239
  %v320 = vpop.f32.mrf.mxu0
  %v321 = vadd.f32 %v281, %v320
  %v322 = vpop.f32.mrf.mxu0
  %v323 = vpop.f32.mrf.mxu0
  %v324 = vpop.f32.mrf.mxu0
  %325 = vdwg.mxu0
  %v327 = vcombine.high %v15, %v15
  %v329 = vunpack.c.l.s4 1983009808
  %v330 = vunpack.c.0.s8 %v329
  %v331 = vlaneseq
  %v332 = vshrl.u32 %v331, 7
  %v333 = vsub.s32 %v330, %v332
  %v334 = vrot.slane %v15, %v333
  %v336 = vunpack.c.l.s4 1983009808
  %v337 = vunpack.c.0.s8 %v336
  %v338 = vlaneseq
  %v339 = vshrl.u32 %v338, 7
  %v340 = vsub.s32 %v337, %v339
  %v341 = vrot.slane %v327, %v340
  %v342 = vcombine.high %v334, %v334
  %v343 = vcombine.high %v341, %v341
  %348 = vmatprep.subr.bf16.mxu0 0
  %349 = vmatpush1.bf16.xpose.msra.mxu0 0
  %350 = vmatprep.subr.bf16.mxu0 0
  %351 = vmatpush1.bf16.xpose.msra.mxu0 0
  %352 = vmatprep.subr.bf16.mxu0 0
  %353 = vmatpush1.bf16.xpose.msra.mxu0 0
  %354 = vmatprep.subr.bf16.mxu0 0
  %355 = vmatpush1.bf16.xpose.msra.mxu0 0
  %356 = vmatprep.subr.bf16.mxu0 0
  %357 = vmatpush1.bf16.xpose.msra.mxu0 0
  %358 = vmatprep.subr.bf16.mxu0 0
  %359 = vmatpush1.bf16.xpose.msra.mxu0 0
  %360 = vmatprep.subr.bf16.mxu0 0
  %361 = vmatpush1.bf16.xpose.msra.mxu0 0
  %362 = vmatprep.subr.bf16.mxu0 %v342
  %363 = vmatpush1.bf16.xpose.msra.mxu0 %v334
  %364 = vmatprep.subr.bf16.mxu0 0
  %365 = vmatpush2.bf16.xpose.msra.mxu0 0
  %366 = vmatprep.subr.bf16.mxu0 0
  %367 = vmatpush2.bf16.xpose.msra.mxu0 0
  %368 = vmatprep.subr.bf16.mxu0 0
  %369 = vmatpush2.bf16.xpose.msra.mxu0 0
  %370 = vmatprep.subr.bf16.mxu0 0
  %371 = vmatpush2.bf16.xpose.msra.mxu0 0
  %372 = vmatprep.subr.bf16.mxu0 0
  %373 = vmatpush2.bf16.xpose.msra.mxu0 0
  %374 = vmatprep.subr.bf16.mxu0 0
  %375 = vmatpush2.bf16.xpose.msra.mxu0 0
  %376 = vmatprep.subr.bf16.mxu0 0
  %377 = vmatpush2.bf16.xpose.msra.mxu0 0
  %378 = vmatprep.subr.bf16.mxu0 0
  %379 = vmatpush2.bf16.xpose.msra.mxu0 0
  %380 = vmatprep.mubr.bf16.mxu0 %v342
  %381 = vmatmul.mubr.bf16.gmra.mxu0 %v334
  %v382 = vpop.f32.mrf.mxu0
  %v383 = vadd.f32 0.0, %v382
  %v384 = vpop.f32.mrf.mxu0
  %v385 = vpop.f32.mrf.mxu0
  %v386 = vpop.f32.mrf.mxu0
  %387 = vdwg.mxu0
  %388 = vmatprep.subr.bf16.mxu0 0
  %389 = vmatpush1.bf16.xpose.msra.mxu0 0
  %390 = vmatprep.subr.bf16.mxu0 0
  %391 = vmatpush1.bf16.xpose.msra.mxu0 0
  %392 = vmatprep.subr.bf16.mxu0 0
  %393 = vmatpush1.bf16.xpose.msra.mxu0 0
  %394 = vmatprep.subr.bf16.mxu0 0
  %395 = vmatpush1.bf16.xpose.msra.mxu0 0
  %396 = vmatprep.subr.bf16.mxu0 0
  %397 = vmatpush1.bf16.xpose.msra.mxu0 0
  %398 = vmatprep.subr.bf16.mxu0 0
  %399 = vmatpush1.bf16.xpose.msra.mxu0 0
  %400 = vmatprep.subr.bf16.mxu0 0
  %401 = vmatpush1.bf16.xpose.msra.mxu0 0
  %402 = vmatprep.subr.bf16.mxu0 %v343
  %403 = vmatpush1.bf16.xpose.msra.mxu0 %v341
  %404 = vmatprep.subr.bf16.mxu0 0
  %405 = vmatpush2.bf16.xpose.msra.mxu0 0
  %406 = vmatprep.subr.bf16.mxu0 0
  %407 = vmatpush2.bf16.xpose.msra.mxu0 0
  %408 = vmatprep.subr.bf16.mxu0 0
  %409 = vmatpush2.bf16.xpose.msra.mxu0 0
  %410 = vmatprep.subr.bf16.mxu0 0
  %411 = vmatpush2.bf16.xpose.msra.mxu0 0
  %412 = vmatprep.subr.bf16.mxu0 0
  %413 = vmatpush2.bf16.xpose.msra.mxu0 0
  %414 = vmatprep.subr.bf16.mxu0 0
  %415 = vmatpush2.bf16.xpose.msra.mxu0 0
  %416 = vmatprep.subr.bf16.mxu0 0
  %417 = vmatpush2.bf16.xpose.msra.mxu0 0
  %418 = vmatprep.subr.bf16.mxu0 0
  %419 = vmatpush2.bf16.xpose.msra.mxu0 0
  %420 = vmatprep.mubr.bf16.mxu0 %v343
  %421 = vmatmul.mubr.bf16.gmra.mxu0 %v341
  %v422 = vpop.f32.mrf.mxu0
  %v423 = vadd.f32 %v383, %v422
  %v424 = vpop.f32.mrf.mxu0
  %v425 = vpop.f32.mrf.mxu0
  %v426 = vpop.f32.mrf.mxu0
  %427 = vdwg.mxu0
  %v429 = vcombine.high %v16, %v16
  %v431 = vunpack.c.l.s4 1983009808
  %v432 = vunpack.c.0.s8 %v431
  %v433 = vlaneseq
  %v434 = vshrl.u32 %v433, 7
  %v435 = vsub.s32 %v432, %v434
  %v436 = vrot.slane %v16, %v435
  %v438 = vunpack.c.l.s4 1983009808
  %v439 = vunpack.c.0.s8 %v438
  %v440 = vlaneseq
  %v441 = vshrl.u32 %v440, 7
  %v442 = vsub.s32 %v439, %v441
  %v443 = vrot.slane %v429, %v442
  %v444 = vcombine.high %v436, %v436
  %v445 = vcombine.high %v443, %v443
  %450 = vmatprep.subr.bf16.mxu0 0
  %451 = vmatpush1.bf16.xpose.msra.mxu0 0
  %452 = vmatprep.subr.bf16.mxu0 0
  %453 = vmatpush1.bf16.xpose.msra.mxu0 0
  %454 = vmatprep.subr.bf16.mxu0 0
  %455 = vmatpush1.bf16.xpose.msra.mxu0 0
  %456 = vmatprep.subr.bf16.mxu0 0
  %457 = vmatpush1.bf16.xpose.msra.mxu0 0
  %458 = vmatprep.subr.bf16.mxu0 0
  %459 = vmatpush1.bf16.xpose.msra.mxu0 0
  %460 = vmatprep.subr.bf16.mxu0 0
  %461 = vmatpush1.bf16.xpose.msra.mxu0 0
  %462 = vmatprep.subr.bf16.mxu0 0
  %463 = vmatpush1.bf16.xpose.msra.mxu0 0
  %464 = vmatprep.subr.bf16.mxu0 %v444
  %465 = vmatpush1.bf16.xpose.msra.mxu0 %v436
  %466 = vmatprep.subr.bf16.mxu0 0
  %467 = vmatpush2.bf16.xpose.msra.mxu0 0
  %468 = vmatprep.subr.bf16.mxu0 0
  %469 = vmatpush2.bf16.xpose.msra.mxu0 0
  %470 = vmatprep.subr.bf16.mxu0 0
  %471 = vmatpush2.bf16.xpose.msra.mxu0 0
  %472 = vmatprep.subr.bf16.mxu0 0
  %473 = vmatpush2.bf16.xpose.msra.mxu0 0
  %474 = vmatprep.subr.bf16.mxu0 0
  %475 = vmatpush2.bf16.xpose.msra.mxu0 0
  %476 = vmatprep.subr.bf16.mxu0 0
  %477 = vmatpush2.bf16.xpose.msra.mxu0 0
  %478 = vmatprep.subr.bf16.mxu0 0
  %479 = vmatpush2.bf16.xpose.msra.mxu0 0
  %480 = vmatprep.subr.bf16.mxu0 0
  %481 = vmatpush2.bf16.xpose.msra.mxu0 0
  %482 = vmatprep.mubr.bf16.mxu0 %v444
  %483 = vmatmul.mubr.bf16.gmra.mxu0 %v436
  %v484 = vpop.f32.mrf.mxu0
  %v485 = vadd.f32 0.0, %v484
  %v486 = vpop.f32.mrf.mxu0
  %v487 = vpop.f32.mrf.mxu0
  %v488 = vpop.f32.mrf.mxu0
  %489 = vdwg.mxu0
  %490 = vmatprep.subr.bf16.mxu0 0
  %491 = vmatpush1.bf16.xpose.msra.mxu0 0
  %492 = vmatprep.subr.bf16.mxu0 0
  %493 = vmatpush1.bf16.xpose.msra.mxu0 0
  %494 = vmatprep.subr.bf16.mxu0 0
  %495 = vmatpush1.bf16.xpose.msra.mxu0 0
  %496 = vmatprep.subr.bf16.mxu0 0
  %497 = vmatpush1.bf16.xpose.msra.mxu0 0
  %498 = vmatprep.subr.bf16.mxu0 0
  %499 = vmatpush1.bf16.xpose.msra.mxu0 0
  %500 = vmatprep.subr.bf16.mxu0 0
  %501 = vmatpush1.bf16.xpose.msra.mxu0 0
  %502 = vmatprep.subr.bf16.mxu0 0
  %503 = vmatpush1.bf16.xpose.msra.mxu0 0
  %504 = vmatprep.subr.bf16.mxu0 %v445
  %505 = vmatpush1.bf16.xpose.msra.mxu0 %v443
  %506 = vmatprep.subr.bf16.mxu0 0
  %507 = vmatpush2.bf16.xpose.msra.mxu0 0
  %508 = vmatprep.subr.bf16.mxu0 0
  %509 = vmatpush2.bf16.xpose.msra.mxu0 0
  %510 = vmatprep.subr.bf16.mxu0 0
  %511 = vmatpush2.bf16.xpose.msra.mxu0 0
  %512 = vmatprep.subr.bf16.mxu0 0
  %513 = vmatpush2.bf16.xpose.msra.mxu0 0
  %514 = vmatprep.subr.bf16.mxu0 0
  %515 = vmatpush2.bf16.xpose.msra.mxu0 0
  %516 = vmatprep.subr.bf16.mxu0 0
  %517 = vmatpush2.bf16.xpose.msra.mxu0 0
  %518 = vmatprep.subr.bf16.mxu0 0
  %519 = vmatpush2.bf16.xpose.msra.mxu0 0
  %520 = vmatprep.subr.bf16.mxu0 0
  %521 = vmatpush2.bf16.xpose.msra.mxu0 0
  %522 = vmatprep.mubr.bf16.mxu0 %v445
  %523 = vmatmul.mubr.bf16.gmra.mxu0 %v443
  %v524 = vpop.f32.mrf.mxu0
  %v525 = vadd.f32 %v485, %v524
  %v526 = vpop.f32.mrf.mxu0
  %v527 = vpop.f32.mrf.mxu0
  %v528 = vpop.f32.mrf.mxu0
  %529 = vdwg.mxu0
  %v531 = vcombine.high %v17, %v17
  %v533 = vunpack.c.l.s4 1983009808
  %v534 = vunpack.c.0.s8 %v533
  %v535 = vlaneseq
  %v536 = vshrl.u32 %v535, 7
  %v537 = vsub.s32 %v534, %v536
  %v538 = vrot.slane %v17, %v537
  %v540 = vunpack.c.l.s4 1983009808
  %v541 = vunpack.c.0.s8 %v540
  %v542 = vlaneseq
  %v543 = vshrl.u32 %v542, 7
  %v544 = vsub.s32 %v541, %v543
  %v545 = vrot.slane %v531, %v544
  %v546 = vcombine.high %v538, %v538
  %v547 = vcombine.high %v545, %v545
  %552 = vmatprep.subr.bf16.mxu0 0
  %553 = vmatpush1.bf16.xpose.msra.mxu0 0
  %554 = vmatprep.subr.bf16.mxu0 0
  %555 = vmatpush1.bf16.xpose.msra.mxu0 0
  %556 = vmatprep.subr.bf16.mxu0 0
  %557 = vmatpush1.bf16.xpose.msra.mxu0 0
  %558 = vmatprep.subr.bf16.mxu0 0
  %559 = vmatpush1.bf16.xpose.msra.mxu0 0
  %560 = vmatprep.subr.bf16.mxu0 0
  %561 = vmatpush1.bf16.xpose.msra.mxu0 0
  %562 = vmatprep.subr.bf16.mxu0 0
  %563 = vmatpush1.bf16.xpose.msra.mxu0 0
  %564 = vmatprep.subr.bf16.mxu0 0
  %565 = vmatpush1.bf16.xpose.msra.mxu0 0
  %566 = vmatprep.subr.bf16.mxu0 %v546
  %567 = vmatpush1.bf16.xpose.msra.mxu0 %v538
  %568 = vmatprep.subr.bf16.mxu0 0
  %569 = vmatpush2.bf16.xpose.msra.mxu0 0
  %570 = vmatprep.subr.bf16.mxu0 0
  %571 = vmatpush2.bf16.xpose.msra.mxu0 0
  %572 = vmatprep.subr.bf16.mxu0 0
  %573 = vmatpush2.bf16.xpose.msra.mxu0 0
  %574 = vmatprep.subr.bf16.mxu0 0
  %575 = vmatpush2.bf16.xpose.msra.mxu0 0
  %576 = vmatprep.subr.bf16.mxu0 0
  %577 = vmatpush2.bf16.xpose.msra.mxu0 0
  %578 = vmatprep.subr.bf16.mxu0 0
  %579 = vmatpush2.bf16.xpose.msra.mxu0 0
  %580 = vmatprep.subr.bf16.mxu0 0
  %581 = vmatpush2.bf16.xpose.msra.mxu0 0
  %582 = vmatprep.subr.bf16.mxu0 0
  %583 = vmatpush2.bf16.xpose.msra.mxu0 0
  %584 = vmatprep.mubr.bf16.mxu0 %v546
  %585 = vmatmul.mubr.bf16.gmra.mxu0 %v538
  %v586 = vpop.f32.mrf.mxu0
  %v587 = vadd.f32 0.0, %v586
  %v588 = vpop.f32.mrf.mxu0
  %v589 = vpop.f32.mrf.mxu0
  %v590 = vpop.f32.mrf.mxu0
  %591 = vdwg.mxu0
  %592 = vmatprep.subr.bf16.mxu0 0
  %593 = vmatpush1.bf16.xpose.msra.mxu0 0
  %594 = vmatprep.subr.bf16.mxu0 0
  %595 = vmatpush1.bf16.xpose.msra.mxu0 0
  %596 = vmatprep.subr.bf16.mxu0 0
  %597 = vmatpush1.bf16.xpose.msra.mxu0 0
  %598 = vmatprep.subr.bf16.mxu0 0
  %599 = vmatpush1.bf16.xpose.msra.mxu0 0
  %600 = vmatprep.subr.bf16.mxu0 0
  %601 = vmatpush1.bf16.xpose.msra.mxu0 0
  %602 = vmatprep.subr.bf16.mxu0 0
  %603 = vmatpush1.bf16.xpose.msra.mxu0 0
  %604 = vmatprep.subr.bf16.mxu0 0
  %605 = vmatpush1.bf16.xpose.msra.mxu0 0
  %606 = vmatprep.subr.bf16.mxu0 %v547
  %607 = vmatpush1.bf16.xpose.msra.mxu0 %v545
  %608 = vmatprep.subr.bf16.mxu0 0
  %609 = vmatpush2.bf16.xpose.msra.mxu0 0
  %610 = vmatprep.subr.bf16.mxu0 0
  %611 = vmatpush2.bf16.xpose.msra.mxu0 0
  %612 = vmatprep.subr.bf16.mxu0 0
  %613 = vmatpush2.bf16.xpose.msra.mxu0 0
  %614 = vmatprep.subr.bf16.mxu0 0
  %615 = vmatpush2.bf16.xpose.msra.mxu0 0
  %616 = vmatprep.subr.bf16.mxu0 0
  %617 = vmatpush2.bf16.xpose.msra.mxu0 0
  %618 = vmatprep.subr.bf16.mxu0 0
  %619 = vmatpush2.bf16.xpose.msra.mxu0 0
  %620 = vmatprep.subr.bf16.mxu0 0
  %621 = vmatpush2.bf16.xpose.msra.mxu0 0
  %622 = vmatprep.subr.bf16.mxu0 0
  %623 = vmatpush2.bf16.xpose.msra.mxu0 0
  %624 = vmatprep.mubr.bf16.mxu0 %v547
  %625 = vmatmul.mubr.bf16.gmra.mxu0 %v545
  %v626 = vpop.f32.mrf.mxu0
  %v627 = vadd.f32 %v587, %v626
  %v628 = vpop.f32.mrf.mxu0
  %v629 = vpop.f32.mrf.mxu0
  %v630 = vpop.f32.mrf.mxu0
  %631 = vdwg.mxu0
  %v633 = vcombine.high %v18, %v18
  %v635 = vunpack.c.l.s4 1983009808
  %v636 = vunpack.c.0.s8 %v635
  %v637 = vlaneseq
  %v638 = vshrl.u32 %v637, 7
  %v639 = vsub.s32 %v636, %v638
  %v640 = vrot.slane %v18, %v639
  %v642 = vunpack.c.l.s4 1983009808
  %v643 = vunpack.c.0.s8 %v642
  %v644 = vlaneseq
  %v645 = vshrl.u32 %v644, 7
  %v646 = vsub.s32 %v643, %v645
  %v647 = vrot.slane %v633, %v646
  %v648 = vcombine.high %v640, %v640
  %v649 = vcombine.high %v647, %v647
  %654 = vmatprep.subr.bf16.mxu0 0
  %655 = vmatpush1.bf16.xpose.msra.mxu0 0
  %656 = vmatprep.subr.bf16.mxu0 0
  %657 = vmatpush1.bf16.xpose.msra.mxu0 0
  %658 = vmatprep.subr.bf16.mxu0 0
  %659 = vmatpush1.bf16.xpose.msra.mxu0 0
  %660 = vmatprep.subr.bf16.mxu0 0
  %661 = vmatpush1.bf16.xpose.msra.mxu0 0
  %662 = vmatprep.subr.bf16.mxu0 0
  %663 = vmatpush1.bf16.xpose.msra.mxu0 0
  %664 = vmatprep.subr.bf16.mxu0 0
  %665 = vmatpush1.bf16.xpose.msra.mxu0 0
  %666 = vmatprep.subr.bf16.mxu0 0
  %667 = vmatpush1.bf16.xpose.msra.mxu0 0
  %668 = vmatprep.subr.bf16.mxu0 %v648
  %669 = vmatpush1.bf16.xpose.msra.mxu0 %v640
  %670 = vmatprep.subr.bf16.mxu0 0
  %671 = vmatpush2.bf16.xpose.msra.mxu0 0
  %672 = vmatprep.subr.bf16.mxu0 0
  %673 = vmatpush2.bf16.xpose.msra.mxu0 0
  %674 = vmatprep.subr.bf16.mxu0 0
  %675 = vmatpush2.bf16.xpose.msra.mxu0 0
  %676 = vmatprep.subr.bf16.mxu0 0
  %677 = vmatpush2.bf16.xpose.msra.mxu0 0
  %678 = vmatprep.subr.bf16.mxu0 0
  %679 = vmatpush2.bf16.xpose.msra.mxu0 0
  %680 = vmatprep.subr.bf16.mxu0 0
  %681 = vmatpush2.bf16.xpose.msra.mxu0 0
  %682 = vmatprep.subr.bf16.mxu0 0
  %683 = vmatpush2.bf16.xpose.msra.mxu0 0
  %684 = vmatprep.subr.bf16.mxu0 0
  %685 = vmatpush2.bf16.xpose.msra.mxu0 0
  %686 = vmatprep.mubr.bf16.mxu0 %v648
  %687 = vmatmul.mubr.bf16.gmra.mxu0 %v640
  %v688 = vpop.f32.mrf.mxu0
  %v689 = vadd.f32 0.0, %v688
  %v690 = vpop.f32.mrf.mxu0
  %v691 = vpop.f32.mrf.mxu0
  %v692 = vpop.f32.mrf.mxu0
  %693 = vdwg.mxu0
  %694 = vmatprep.subr.bf16.mxu0 0
  %695 = vmatpush1.bf16.xpose.msra.mxu0 0
  %696 = vmatprep.subr.bf16.mxu0 0
  %697 = vmatpush1.bf16.xpose.msra.mxu0 0
  %698 = vmatprep.subr.bf16.mxu0 0
  %699 = vmatpush1.bf16.xpose.msra.mxu0 0
  %700 = vmatprep.subr.bf16.mxu0 0
  %701 = vmatpush1.bf16.xpose.msra.mxu0 0
  %702 = vmatprep.subr.bf16.mxu0 0
  %703 = vmatpush1.bf16.xpose.msra.mxu0 0
  %704 = vmatprep.subr.bf16.mxu0 0
  %705 = vmatpush1.bf16.xpose.msra.mxu0 0
  %706 = vmatprep.subr.bf16.mxu0 0
  %707 = vmatpush1.bf16.xpose.msra.mxu0 0
  %708 = vmatprep.subr.bf16.mxu0 %v649
  %709 = vmatpush1.bf16.xpose.msra.mxu0 %v647
  %710 = vmatprep.subr.bf16.mxu0 0
  %711 = vmatpush2.bf16.xpose.msra.mxu0 0
  %712 = vmatprep.subr.bf16.mxu0 0
  %713 = vmatpush2.bf16.xpose.msra.mxu0 0
  %714 = vmatprep.subr.bf16.mxu0 0
  %715 = vmatpush2.bf16.xpose.msra.mxu0 0
  %716 = vmatprep.subr.bf16.mxu0 0
  %717 = vmatpush2.bf16.xpose.msra.mxu0 0
  %718 = vmatprep.subr.bf16.mxu0 0
  %719 = vmatpush2.bf16.xpose.msra.mxu0 0
  %720 = vmatprep.subr.bf16.mxu0 0
  %721 = vmatpush2.bf16.xpose.msra.mxu0 0
  %722 = vmatprep.subr.bf16.mxu0 0
  %723 = vmatpush2.bf16.xpose.msra.mxu0 0
  %724 = vmatprep.subr.bf16.mxu0 0
  %725 = vmatpush2.bf16.xpose.msra.mxu0 0
  %726 = vmatprep.mubr.bf16.mxu0 %v649
  %727 = vmatmul.mubr.bf16.gmra.mxu0 %v647
  %v728 = vpop.f32.mrf.mxu0
  %v729 = vadd.f32 %v689, %v728
  %v730 = vpop.f32.mrf.mxu0
  %v731 = vpop.f32.mrf.mxu0
  %v732 = vpop.f32.mrf.mxu0
  %733 = vdwg.mxu0
  %v735 = vcombine.high %v19, %v19
  %v737 = vunpack.c.l.s4 1983009808
  %v738 = vunpack.c.0.s8 %v737
  %v739 = vlaneseq
  %v740 = vshrl.u32 %v739, 7
  %v741 = vsub.s32 %v738, %v740
  %v742 = vrot.slane %v19, %v741
  %v744 = vunpack.c.l.s4 1983009808
  %v745 = vunpack.c.0.s8 %v744
  %v746 = vlaneseq
  %v747 = vshrl.u32 %v746, 7
  %v748 = vsub.s32 %v745, %v747
  %v749 = vrot.slane %v735, %v748
  %v750 = vcombine.high %v742, %v742
  %v751 = vcombine.high %v749, %v749
  %756 = vmatprep.subr.bf16.mxu0 0
  %757 = vmatpush1.bf16.xpose.msra.mxu0 0
  %758 = vmatprep.subr.bf16.mxu0 0
  %759 = vmatpush1.bf16.xpose.msra.mxu0 0
  %760 = vmatprep.subr.bf16.mxu0 0
  %761 = vmatpush1.bf16.xpose.msra.mxu0 0
  %762 = vmatprep.subr.bf16.mxu0 0
  %763 = vmatpush1.bf16.xpose.msra.mxu0 0
  %764 = vmatprep.subr.bf16.mxu0 0
  %765 = vmatpush1.bf16.xpose.msra.mxu0 0
  %766 = vmatprep.subr.bf16.mxu0 0
  %767 = vmatpush1.bf16.xpose.msra.mxu0 0
  %768 = vmatprep.subr.bf16.mxu0 0
  %769 = vmatpush1.bf16.xpose.msra.mxu0 0
  %770 = vmatprep.subr.bf16.mxu0 %v750
  %771 = vmatpush1.bf16.xpose.msra.mxu0 %v742
  %772 = vmatprep.subr.bf16.mxu0 0
  %773 = vmatpush2.bf16.xpose.msra.mxu0 0
  %774 = vmatprep.subr.bf16.mxu0 0
  %775 = vmatpush2.bf16.xpose.msra.mxu0 0
  %776 = vmatprep.subr.bf16.mxu0 0
  %777 = vmatpush2.bf16.xpose.msra.mxu0 0
  %778 = vmatprep.subr.bf16.mxu0 0
  %779 = vmatpush2.bf16.xpose.msra.mxu0 0
  %780 = vmatprep.subr.bf16.mxu0 0
  %781 = vmatpush2.bf16.xpose.msra.mxu0 0
  %782 = vmatprep.subr.bf16.mxu0 0
  %783 = vmatpush2.bf16.xpose.msra.mxu0 0
  %784 = vmatprep.subr.bf16.mxu0 0
  %785 = vmatpush2.bf16.xpose.msra.mxu0 0
  %786 = vmatprep.subr.bf16.mxu0 0
  %787 = vmatpush2.bf16.xpose.msra.mxu0 0
  %788 = vmatprep.mubr.bf16.mxu0 %v750
  %789 = vmatmul.mubr.bf16.gmra.mxu0 %v742
  %v790 = vpop.f32.mrf.mxu0
  %v791 = vadd.f32 0.0, %v790
  %v792 = vpop.f32.mrf.mxu0
  %v793 = vpop.f32.mrf.mxu0
  %v794 = vpop.f32.mrf.mxu0
  %795 = vdwg.mxu0
  %796 = vmatprep.subr.bf16.mxu0 0
  %797 = vmatpush1.bf16.xpose.msra.mxu0 0
  %798 = vmatprep.subr.bf16.mxu0 0
  %799 = vmatpush1.bf16.xpose.msra.mxu0 0
  %800 = vmatprep.subr.bf16.mxu0 0
  %801 = vmatpush1.bf16.xpose.msra.mxu0 0
  %802 = vmatprep.subr.bf16.mxu0 0
  %803 = vmatpush1.bf16.xpose.msra.mxu0 0
  %804 = vmatprep.subr.bf16.mxu0 0
  %805 = vmatpush1.bf16.xpose.msra.mxu0 0
  %806 = vmatprep.subr.bf16.mxu0 0
  %807 = vmatpush1.bf16.xpose.msra.mxu0 0
  %808 = vmatprep.subr.bf16.mxu0 0
  %809 = vmatpush1.bf16.xpose.msra.mxu0 0
  %810 = vmatprep.subr.bf16.mxu0 %v751
  %811 = vmatpush1.bf16.xpose.msra.mxu0 %v749
  %812 = vmatprep.subr.bf16.mxu0 0
  %813 = vmatpush2.bf16.xpose.msra.mxu0 0
  %814 = vmatprep.subr.bf16.mxu0 0
  %815 = vmatpush2.bf16.xpose.msra.mxu0 0
  %816 = vmatprep.subr.bf16.mxu0 0
  %817 = vmatpush2.bf16.xpose.msra.mxu0 0
  %818 = vmatprep.subr.bf16.mxu0 0
  %819 = vmatpush2.bf16.xpose.msra.mxu0 0
  %820 = vmatprep.subr.bf16.mxu0 0
  %821 = vmatpush2.bf16.xpose.msra.mxu0 0
  %822 = vmatprep.subr.bf16.mxu0 0
  %823 = vmatpush2.bf16.xpose.msra.mxu0 0
  %824 = vmatprep.subr.bf16.mxu0 0
  %825 = vmatpush2.bf16.xpose.msra.mxu0 0
  %826 = vmatprep.subr.bf16.mxu0 0
  %827 = vmatpush2.bf16.xpose.msra.mxu0 0
  %828 = vmatprep.mubr.bf16.mxu0 %v751
  %829 = vmatmul.mubr.bf16.gmra.mxu0 %v749
  %v830 = vpop.f32.mrf.mxu0
  %v831 = vadd.f32 %v791, %v830
  %v832 = vpop.f32.mrf.mxu0
  %v833 = vpop.f32.mrf.mxu0
  %v834 = vpop.f32.mrf.mxu0
  %835 = vdwg.mxu0
  %v836 = vmul.f32 %v117, %v117
  %v837 = vmul.f32 %v219, %v219
  %v838 = vmul.f32 %v321, %v321
  %v839 = vmul.f32 %v423, %v423
  %vm840 = vcmask 27648
  %v841 = vsel %vm840, %v836, 0.0
  %842 = vadd.xlane.f32.xlu0 %v841
  %v843 = vpop.xlane.xlu0 %842
  %v844 = vsel %vm840, %v837, 0.0
  %845 = vadd.xlane.f32.xlu0 %v844
  %v846 = vpop.xlane.xlu0 %845
  %v847 = vsel %vm840, %v838, 0.0
  %848 = vadd.xlane.f32.xlu0 %v847
  %v849 = vpop.xlane.xlu0 %848
  %v850 = vsel %vm840, %v839, 0.0
  %851 = vadd.xlane.f32.xlu0 %v850
  %v852 = vpop.xlane.xlu0 %851
  %v853 = vmul.f32 %v525, %v525
  %v854 = vmul.f32 %v627, %v627
  %v855 = vmul.f32 %v729, %v729
  %v856 = vmul.f32 %v831, %v831
  %v857 = vsel %vm840, %v853, 0.0
  %858 = vadd.xlane.f32.xlu0 %v857
  %v859 = vpop.xlane.xlu0 %858
  %v860 = vsel %vm840, %v854, 0.0
  %861 = vadd.xlane.f32.xlu0 %v860
  %v862 = vpop.xlane.xlu0 %861
  %v863 = vsel %vm840, %v855, 0.0
  %864 = vadd.xlane.f32.xlu0 %v863
  %v865 = vpop.xlane.xlu0 %864
  %v866 = vsel %vm840, %v856, 0.0
  %867 = vadd.xlane.f32.xlu0 %v866
  %v868 = vpop.xlane.xlu0 %867
  %v869 = vmul.f32 %v117, %v525
  %v870 = vmul.f32 %v219, %v627
  %v871 = vmul.f32 %v321, %v729
  %v872 = vmul.f32 %v423, %v831
  %v873 = vsel %vm840, %v869, 0.0
  %874 = vadd.xlane.f32.xlu0 %v873
  %v875 = vpop.xlane.xlu0 %874
  %v876 = vsel %vm840, %v870, 0.0
  %877 = vadd.xlane.f32.xlu0 %v876
  %v878 = vpop.xlane.xlu0 %877
  %v879 = vsel %vm840, %v871, 0.0
  %880 = vadd.xlane.f32.xlu0 %v879
  %v881 = vpop.xlane.xlu0 %880
  %v882 = vsel %vm840, %v872, 0.0
  %883 = vadd.xlane.f32.xlu0 %v882
  %v884 = vpop.xlane.xlu0 %883
  %v885 = vrsqrt.pop %v843
  %v886 = vmul.f32 %v843, %v885
  %vm887 = vcmp.eq.f32.partialorder %v843, inf
  %v888 = vsel %vm887, %v843, %v886
  %vm889 = vcmp.eq.f32.partialorder %v843, 0.0
  %v890 = vand.u32 %v843, 2147483648
  %v891 = vsel %vm889, %v890, %v888
  %v892 = vrsqrt.pop %v846
  %v893 = vmul.f32 %v846, %v892
  %vm894 = vcmp.eq.f32.partialorder %v846, inf
  %v895 = vsel %vm894, %v846, %v893
  %vm896 = vcmp.eq.f32.partialorder %v846, 0.0
  %v897 = vand.u32 %v846, 2147483648
  %v898 = vsel %vm896, %v897, %v895
  %v899 = vrsqrt.pop %v849
  %v900 = vmul.f32 %v849, %v899
  %vm901 = vcmp.eq.f32.partialorder %v849, inf
  %v902 = vsel %vm901, %v849, %v900
  %vm903 = vcmp.eq.f32.partialorder %v849, 0.0
  %v904 = vand.u32 %v849, 2147483648
  %v905 = vsel %vm903, %v904, %v902
  %v906 = vrsqrt.pop %v852
  %v907 = vmul.f32 %v852, %v906
  %vm908 = vcmp.eq.f32.partialorder %v852, inf
  %v909 = vsel %vm908, %v852, %v907
  %vm910 = vcmp.eq.f32.partialorder %v852, 0.0
  %v911 = vand.u32 %v852, 2147483648
  %v912 = vsel %vm910, %v911, %v909
  %v913 = vmax.f32 %v891, 1e-12
  %v914 = vmax.f32 %v898, 1e-12
  %v915 = vmax.f32 %v905, 1e-12
  %v916 = vmax.f32 %v912, 1e-12
  %v917 = vrsqrt.pop %v859
  %v918 = vmul.f32 %v859, %v917
  %vm919 = vcmp.eq.f32.partialorder %v859, inf
  %v920 = vsel %vm919, %v859, %v918
  %vm921 = vcmp.eq.f32.partialorder %v859, 0.0
  %v922 = vand.u32 %v859, 2147483648
  %v923 = vsel %vm921, %v922, %v920
  %v924 = vrsqrt.pop %v862
  %v925 = vmul.f32 %v862, %v924
  %vm926 = vcmp.eq.f32.partialorder %v862, inf
  %v927 = vsel %vm926, %v862, %v925
  %vm928 = vcmp.eq.f32.partialorder %v862, 0.0
  %v929 = vand.u32 %v862, 2147483648
  %v930 = vsel %vm928, %v929, %v927
  %v931 = vrsqrt.pop %v865
  %v932 = vmul.f32 %v865, %v931
  %vm933 = vcmp.eq.f32.partialorder %v865, inf
  %v934 = vsel %vm933, %v865, %v932
  %vm935 = vcmp.eq.f32.partialorder %v865, 0.0
  %v936 = vand.u32 %v865, 2147483648
  %v937 = vsel %vm935, %v936, %v934
  %v938 = vrsqrt.pop %v868
  %v939 = vmul.f32 %v868, %v938
  %vm940 = vcmp.eq.f32.partialorder %v868, inf
  %v941 = vsel %vm940, %v868, %v939
  %vm942 = vcmp.eq.f32.partialorder %v868, 0.0
  %v943 = vand.u32 %v868, 2147483648
  %v944 = vsel %vm942, %v943, %v941
  %v945 = vmax.f32 %v923, 1e-12
  %v946 = vmax.f32 %v930, 1e-12
  %v947 = vmax.f32 %v937, 1e-12
  %v948 = vmax.f32 %v944, 1e-12
  %v949 = vmul.f32 %v913, %v913
  %v950 = vmul.f32 %v914, %v914
  %v951 = vmul.f32 %v915, %v915
  %v952 = vmul.f32 %v916, %v916
  %v953 = vrcp.pop %v949
  %v954 = vmul.f32 %v843, %v953
  %v955 = vrcp.pop %v950
  %v956 = vmul.f32 %v846, %v955
  %v957 = vrcp.pop %v951
  %v958 = vmul.f32 %v849, %v957
  %v959 = vrcp.pop %v952
  %v960 = vmul.f32 %v852, %v959
  %v961 = vmul.f32 %v945, %v945
  %v962 = vmul.f32 %v946, %v946
  %v963 = vmul.f32 %v947, %v947
  %v964 = vmul.f32 %v948, %v948
  %v965 = vrcp.pop %v961
  %v966 = vmul.f32 %v859, %v965
  %v967 = vrcp.pop %v962
  %v968 = vmul.f32 %v862, %v967
  %v969 = vrcp.pop %v963
  %v970 = vmul.f32 %v865, %v969
  %v971 = vrcp.pop %v964
  %v972 = vmul.f32 %v868, %v971
  %v973 = vadd.f32 %v954, %v966
  %v974 = vadd.f32 %v956, %v968
  %v975 = vadd.f32 %v958, %v970
  %v976 = vadd.f32 %v960, %v972
  %v977 = vmul.f32 %v973, 0.5
  %v978 = vmul.f32 %v974, 0.5
  %v979 = vmul.f32 %v975, 0.5
  %v980 = vmul.f32 %v976, 0.5
  %v981 = vmul.f32 %v875, 2.0
  %v982 = vmul.f32 %v878, 2.0
  %v983 = vmul.f32 %v881, 2.0
  %v984 = vmul.f32 %v884, 2.0
  %v985 = vmul.f32 %v913, %v945
  %v986 = vmul.f32 %v914, %v946
  %v987 = vmul.f32 %v915, %v947
  %v988 = vmul.f32 %v916, %v948
  %v989 = vrcp.pop %v985
  %v990 = vmul.f32 %v981, %v989
  %v991 = vrcp.pop %v986
  %v992 = vmul.f32 %v982, %v991
  %v993 = vrcp.pop %v987
  %v994 = vmul.f32 %v983, %v993
  %v995 = vrcp.pop %v988
  %v996 = vmul.f32 %v984, %v995
  %v997 = vsub.f32 %v977, %v990
  %v998 = vsub.f32 %v978, %v992
  %v999 = vsub.f32 %v979, %v994
  %v1000 = vsub.f32 %v980, %v996
  %vm1001 = vcmask 3072
  %v1002 = vsel %vm1001, %v997, 0.0
  %v1003 = vsel %vm1001, %v998, 0.0
  %v1004 = vadd.f32 %v1002, %v1003
  %v1005 = vsel %vm1001, %v999, 0.0
  %v1006 = vadd.f32 %v1004, %v1005
  %v1007 = vsel %vm1001, %v1000, 0.0
  %v1008 = vadd.f32 %v1006, %v1007
  %1009 = vadd.xlane.f32.xlu0 %v1008
  %v1010 = vpop.xlane.xlu0 %1009
  %v1011 = vrot.slane %v1010, 4
  %v1012 = vadd.f32 %v1010, %v1011
  %v1013 = vrot.slane %v1012, 2
  %v1014 = vadd.f32 %v1012, %v1013
  %v1015 = vrot.slane %v1014, 1
  %v1016 = vadd.f32 %v1014, %v1015
  %s1017 = vtos %v1016
  %s1018 = smul.f32 %s1017, 0.0625
  %v1019 = vstv %s1018
  %1020 = vst [vmem:[%s2] sm:$0xff] %v1019
  // Predicated region
  $region10: #{at_loss_patch_mmd.1} parent=0 // pred_check
    _
  $region11: #{at_loss_patch_mmd.1} parent=0 // pred_check_branch
    %1022 = sbr.rel (0) target = $region13
  $region12: #{at_loss_patch_mmd.1} parent=0 // pred_region
    _
  $region13: #{at_loss_patch_mmd.1} parent=0 // pred_fallthru
    _
  // Predicated region
  $region14: #{at_loss_patch_mmd.1} parent=0 // pred_check
    _
  $region15: #{at_loss_patch_mmd.1} parent=0 // pred_check_branch
    %1024 = sbr.rel (0) target = $region17
  $region16: #{at_loss_patch_mmd.1} parent=0 // pred_region
    _
  $region17: #{at_loss_patch_mmd.1} parent=0 // pred_fallthru
    _

</llo_original>
